<compile_context>
chip_gen: v7x
topology: tpu7x:2x2x1
jax: 0.10.0
libtpu: 0.0.40
codegen_flags: <defaults>
</compile_context>

<pallas_src>
import jax
import jax.numpy as jnp
from jax import lax
from jax.experimental import pallas as pl
from jax.experimental.pallas import tpu as pltpu


# --------------------------------------------------------------------------
# Kernels
# --------------------------------------------------------------------------
def _noisy_linear_kernel_train(x_ref, wmu_ref, wsig_ref, weps_ref,
                               bmu_ref, bsig_ref, beps_ref,
                               out_ref, acc_ref):
    k = pl.program_id(2)

    # Build the noisy weight tile on-chip (VPU FMA) and feed the MXU with
    # contracting dims (1, 1) -> no materialized transpose.
    weight = wmu_ref[...] + wsig_ref[...] * weps_ref[...]          # (TN, TK)
    partial = lax.dot_general(
        x_ref[...], weight,
        dimension_numbers=(((1,), (1,)), ((), ())),
        preferred_element_type=jnp.float32)                        # (TB, TN)

    @pl.when(k == 0)
    def _():
        acc_ref[...] = partial                 # first K tile: plain store

    @pl.when(k > 0)
    def _():
        acc_ref[...] += partial                # later K tiles: accumulate

    @pl.when(k == pl.num_programs(2) - 1)
    def _():
        bias = (bmu_ref[...] + bsig_ref[...] * beps_ref[...]).astype(jnp.float32)
        out_ref[...] = (acc_ref[...] + bias).astype(out_ref.dtype)


def _noisy_linear_kernel_eval(x_ref, wmu_ref, bmu_ref, out_ref, acc_ref):
    k = pl.program_id(2)

    partial = lax.dot_general(
        x_ref[...], wmu_ref[...],
        dimension_numbers=(((1,), (1,)), ((), ())),
        preferred_element_type=jnp.float32)

    @pl.when(k == 0)
    def _():
        acc_ref[...] = partial

    @pl.when(k > 0)
    def _():
        acc_ref[...] += partial

    @pl.when(k == pl.num_programs(2) - 1)
    def _():
        out_ref[...] = (acc_ref[...]
                        + bmu_ref[...].astype(jnp.float32)).astype(out_ref.dtype)


# --------------------------------------------------------------------------
# Tiling / padding helpers
# --------------------------------------------------------------------------
def _round_up(x, m):
    return ((x + m - 1) // m) * m


def _tile_and_pad(dim, cap, align):
    """Return (padded_dim, tile) with tile % align == 0 and padded_dim % tile == 0.

    Small dims become a single padded tile; large dims prefer an aligned
    divisor <= cap, otherwise pad up to a multiple of cap.
    """
    d = _round_up(dim, align)
    if d <= cap:
        return d, d
    cap = (cap // align) * align
    t = cap
    while t >= align:
        if d % t == 0:
            return d, t
        t -= align
    return _round_up(dim, cap), cap


def _pad2(a, rows, cols):
    pr, pc = rows - a.shape[0], cols - a.shape[1]
    if pr or pc:
        a = jnp.pad(a, ((0, pr), (0, pc)))
    return a


# --------------------------------------------------------------------------
# Wrapper
# --------------------------------------------------------------------------
def noisy_linear(x, weight_mu, weight_sigma, weight_epsilon,
                 bias_mu, bias_sigma, bias_epsilon, *,
                 training=True, compute_dtype=None):
    """Pallas implementation of NoisyLinear.forward.

    x:        (B, In)   float32
    weight_*: (Out, In) float32
    bias_*:   (Out,)    float32
    compute_dtype: None (f32, matches PyTorch exactly) or jnp.bfloat16 to
        stream x / weight tensors in bf16 (f32 MXU accumulator kept).
    returns:  (B, Out)  float32
    """
    B, In = x.shape
    Out, _ = weight_mu.shape

    wdt = jnp.dtype(jnp.float32) if compute_dtype is None else jnp.dtype(compute_dtype)
    b_align = 16 if wdt == jnp.dtype(jnp.bfloat16) else 8

    # --- tiling: batch in one tile when possible; Out/In padded to 128 ------
    B_pad, TB = _tile_and_pad(B, 1024, b_align)
    Out_pad, TN = _tile_and_pad(Out, 512, 128)
    In_pad, TK = _tile_and_pad(In, 1024, 128)

    # v7x: make sure the "parallel" part of the grid has >= 2 tiles so the
    # second TensorCore gets work (no effect on single-TC v5e/v6e correctness).
    if (B_pad // TB) * (Out_pad // TN) == 1 and TN >= 256 and TN % 256 == 0:
        TN //= 2

    grid = (B_pad // TB, Out_pad // TN, In_pad // TK)   # reduction (In) last

    # --- pad / cast operands -------------------------------------------------
    x_p = _pad2(x, B_pad, In_pad).astype(wdt)
    wmu_p = _pad2(weight_mu, Out_pad, In_pad).astype(wdt)
    bmu_p = _pad2(bias_mu.reshape(1, Out), 1, Out_pad)            # f32 (tiny)

    x_spec = pl.BlockSpec((TB, TK), lambda b, n, k: (b, k))
    w_spec = pl.BlockSpec((TN, TK), lambda b, n, k: (n, k))
    b_spec = pl.BlockSpec((1, TN), lambda b, n, k: (0, n))
    out_spec = pl.BlockSpec((TB, TN), lambda b, n, k: (b, n))

    if training:
        wsig_p = _pad2(weight_sigma, Out_pad, In_pad).astype(wdt)
        weps_p = _pad2(weight_epsilon, Out_pad, In_pad).astype(wdt)
        bsig_p = _pad2(bias_sigma.reshape(1, Out), 1, Out_pad)
        beps_p = _pad2(bias_epsilon.reshape(1, Out), 1, Out_pad)
        kernel = _noisy_linear_kernel_train
        in_specs = [x_spec, w_spec, w_spec, w_spec, b_spec, b_spec, b_spec]
        args = (x_p, wmu_p, wsig_p, weps_p, bmu_p, bsig_p, beps_p)
        n_w = 3
    else:
        # Eval never reads the noise tensors -> do not DMA them at all.
        kernel = _noisy_linear_kernel_eval
        in_specs = [x_spec, w_spec, b_spec]
        args = (x_p, wmu_p, bmu_p)
        n_w = 1

    wbytes = wdt.itemsize
    cost = pl.CostEstimate(
        flops=2 * B_pad * Out_pad * In_pad,
        transcendentals=0,
        bytes_accessed=(wbytes * B_pad * In_pad * grid[1]        # x per N tile
                        + wbytes * n_w * Out_pad * In_pad * grid[0]  # w per B tile
                        + 4 * n_w * Out_pad
                        + 4 * B_pad * Out_pad))

    out = pl.pallas_call(
        kernel,
        out_shape=jax.ShapeDtypeStruct((B_pad, Out_pad), jnp.float32),
        grid_spec=pltpu.PrefetchScalarGridSpec(
            num_scalar_prefetch=0,
            grid=grid,
            in_specs=in_specs,
            out_specs=out_spec,
            scratch_shapes=[pltpu.VMEM((TB, TN), jnp.float32)]),
        compiler_params=pltpu.CompilerParams(
            dimension_semantics=("parallel", "parallel", "arbitrary"),
            vmem_limit_bytes=48 * 1024 * 1024),
        cost_estimate=cost,
    )(*args)

    return out[:B, :Out]


# --------------------------------------------------------------------------
# Parameter / noise init matching NoisyLinear.__init__ + reset_* semantics.
# --------------------------------------------------------------------------
def init_noisy_linear_params(key, in_features, out_features, sigma_init=0.017):
    k_wmu, k_bmu, k_weps, k_beps = jax.random.split(key, 4)
    mu_range = 1.0 / jnp.sqrt(jnp.float32(in_features))

    weight_mu = jax.random.uniform(
        k_wmu, (out_features, in_features), jnp.float32, -mu_range, mu_range)
    bias_mu = jax.random.uniform(
        k_bmu, (out_features,), jnp.float32, -mu_range, mu_range)

    weight_sigma = jnp.full((out_features, in_features),
                            sigma_init / jnp.sqrt(jnp.float32(in_features)),
                            jnp.float32)
    # NB: the reference module uses sqrt(out_features) for the bias sigma.
    bias_sigma = jnp.full((out_features,),
                          sigma_init / jnp.sqrt(jnp.float32(out_features)),
                          jnp.float32)

    # reset_noise(): independent standard-normal epsilon buffers (the reference
    # module is not factorized).
    weight_epsilon = jax.random.normal(
        k_weps, (out_features, in_features), jnp.float32)
    bias_epsilon = jax.random.normal(k_beps, (out_features,), jnp.float32)

    return dict(weight_mu=weight_mu, weight_sigma=weight_sigma,
                weight_epsilon=weight_epsilon,
                bias_mu=bias_mu, bias_sigma=bias_sigma,
                bias_epsilon=bias_epsilon)


def _reference(x, p, training):
    if training:
        w = p["weight_mu"] + p["weight_sigma"] * p["weight_epsilon"]
        b = p["bias_mu"] + p["bias_sigma"] * p["bias_epsilon"]
    else:
        w, b = p["weight_mu"], p["bias_mu"]
    return x @ w.T + b


def _run_case(key, batch, in_features, out_features,
              compute_dtype=None, atol=1e-4, rtol=1e-4):
    k_x, k_p = jax.random.split(key)
    x = jax.random.normal(k_x, (batch, in_features), jnp.float32)
    p = init_noisy_linear_params(k_p, in_features, out_features)

    for training in (True, False):
        y = jax.block_until_ready(
            noisy_linear(x, p["weight_mu"], p["weight_sigma"],
                         p["weight_epsilon"], p["bias_mu"], p["bias_sigma"],
                         p["bias_epsilon"], training=training,
                         compute_dtype=compute_dtype))
        y_ref = _reference(x, p, training)
        assert y.shape == (batch, out_features)
        assert jnp.allclose(y, y_ref, atol=atol, rtol=rtol), (
            f"mismatch (training={training}, shape={x.shape}, "
            f"dtype={compute_dtype})")


if __name__ == "__main__":
    key = jax.random.PRNGKey(0)
    k0, k1, k2 = jax.random.split(key, 3)

    # Lane-aligned shapes (Out, In multiples of 128) — preferred layout.
    _run_case(k0, batch=8, in_features=128, out_features=256)
    # Small / unaligned shapes exercise the pad-to-128 path (output sliced).
    _run_case(k1, batch=4, in_features=32, out_features=64)
    # Optional bf16 streaming path (f32 accumulator); looser tolerance.
    _run_case(k2, batch=8, in_features=128, out_features=256,
              compute_dtype=jnp.bfloat16, atol=5e-2, rtol=5e-2)

    print("KERNEL_OK")
</pallas_src>

<mosaic_0001>
module attributes {stable_mosaic.version = 11 : i64} {
  func.func @_noisy_linear_kernel_train(%arg0: i32, %arg1: i32, %arg2: i32, %arg3: memref<8x128xf32, #tpu.memory_space<vmem>>, %arg4: memref<128x128xf32, #tpu.memory_space<vmem>>, %arg5: memref<128x128xf32, #tpu.memory_space<vmem>>, %arg6: memref<128x128xf32, #tpu.memory_space<vmem>>, %arg7: memref<1x128xf32, #tpu.memory_space<vmem>>, %arg8: memref<1x128xf32, #tpu.memory_space<vmem>>, %arg9: memref<1x128xf32, #tpu.memory_space<vmem>>, %arg10: memref<8x128xf32, #tpu.memory_space<vmem>>, %arg11: memref<8x128xf32, #tpu.memory_space<vmem>>) attributes {dimension_semantics = [#tpu.dimension_semantics<parallel>, #tpu.dimension_semantics<parallel>, #tpu.dimension_semantics<arbitrary>], iteration_bounds = array<i64: 1, 2, 1>, scalar_prefetch = 0 : i64, scratch_operands = 1 : i64, tpu.core_type = #tpu.core_type<tc>, window_params = [{transform_indices = @transform_0, window_bounds = array<i64: 8, 128>}, {transform_indices = @transform_1, window_bounds = array<i64: 128, 128>}, {transform_indices = @transform_2, window_bounds = array<i64: 128, 128>}, {transform_indices = @transform_3, window_bounds = array<i64: 128, 128>}, {transform_indices = @transform_4, window_bounds = array<i64: 1, 128>}, {transform_indices = @transform_5, window_bounds = array<i64: 1, 128>}, {transform_indices = @transform_6, window_bounds = array<i64: 1, 128>}, {transform_indices = @transform_7, window_bounds = array<i64: 8, 128>}]} {
    %c0 = arith.constant 0 : index
    %c0_0 = arith.constant 0 : index
    %0 = vector.load %arg4[%c0, %c0_0] : memref<128x128xf32, #tpu.memory_space<vmem>>, vector<128x128xf32>
    %c0_1 = arith.constant 0 : index
    %c0_2 = arith.constant 0 : index
    %1 = vector.load %arg5[%c0_1, %c0_2] : memref<128x128xf32, #tpu.memory_space<vmem>>, vector<128x128xf32>
    %c0_3 = arith.constant 0 : index
    %c0_4 = arith.constant 0 : index
    %2 = vector.load %arg6[%c0_3, %c0_4] : memref<128x128xf32, #tpu.memory_space<vmem>>, vector<128x128xf32>
    %3 = arith.mulf %1, %2 : vector<128x128xf32>
    %4 = arith.addf %0, %3 : vector<128x128xf32>
    %c0_5 = arith.constant 0 : index
    %c0_6 = arith.constant 0 : index
    %5 = vector.load %arg3[%c0_5, %c0_6] : memref<8x128xf32, #tpu.memory_space<vmem>>, vector<8x128xf32>
    %cst = arith.constant dense<0.000000e+00> : vector<8x128xf32>
    %6 = tpu.matmul %5, %4, %cst {dimension_numbers = #tpu.dot_dimension_numbers<[1], [1], [0], [0], [0, 0, 1, 0], [], []>} : vector<8x128xf32>, vector<128x128xf32>, vector<8x128xf32> -> vector<8x128xf32>
    %c0_i32 = arith.constant 0 : i32
    %7 = arith.cmpi eq, %arg2, %c0_i32 : i32
    %8 = arith.extui %7 : i1 to i32
    %c0_i32_7 = arith.constant 0 : i32
    %9 = arith.cmpi ne, %8, %c0_i32_7 : i32
    scf.if %9 {
      %c0_12 = arith.constant 0 : index
      %c0_13 = arith.constant 0 : index
      %16 = vector.load %arg11[%c0_12, %c0_13] : memref<8x128xf32, #tpu.memory_space<vmem>>, vector<8x128xf32>
      tpu.vector_store %arg11[%c0_12, %c0_13], %6 {strides = array<i32>} : memref<8x128xf32, #tpu.memory_space<vmem>>, vector<8x128xf32>,
    } else {
    }
    %c0_i32_8 = arith.constant 0 : i32
    %10 = arith.cmpi sgt, %arg2, %c0_i32_8 : i32
    %11 = arith.extui %10 : i1 to i32
    %c0_i32_9 = arith.constant 0 : i32
    %12 = arith.cmpi ne, %11, %c0_i32_9 : i32
    scf.if %12 {
      %c0_12 = arith.constant 0 : index
      %c0_13 = arith.constant 0 : index
      %16 = vector.load %arg11[%c0_12, %c0_13] : memref<8x128xf32, #tpu.memory_space<vmem>>, vector<8x128xf32>
      %17 = arith.addf %16, %6 : vector<8x128xf32>
      %c0_14 = arith.constant 0 : index
      %c0_15 = arith.constant 0 : index
      %18 = vector.load %arg11[%c0_14, %c0_15] : memref<8x128xf32, #tpu.memory_space<vmem>>, vector<8x128xf32>
      tpu.vector_store %arg11[%c0_14, %c0_15], %17 {strides = array<i32>} : memref<8x128xf32, #tpu.memory_space<vmem>>, vector<8x128xf32>,
    } else {
    }
    %c0_i32_10 = arith.constant 0 : i32
    %13 = arith.cmpi eq, %arg2, %c0_i32_10 : i32
    %14 = arith.extui %13 : i1 to i32
    %c0_i32_11 = arith.constant 0 : i32
    %15 = arith.cmpi ne, %14, %c0_i32_11 : i32
    scf.if %15 {
      %c0_12 = arith.constant 0 : index
      %c0_13 = arith.constant 0 : index
      %16 = vector.load %arg7[%c0_12, %c0_13] : memref<1x128xf32, #tpu.memory_space<vmem>>, vector<1x128xf32>
      %c0_14 = arith.constant 0 : index
      %c0_15 = arith.constant 0 : index
      %17 = vector.load %arg8[%c0_14, %c0_15] : memref<1x128xf32, #tpu.memory_space<vmem>>, vector<1x128xf32>
      %c0_16 = arith.constant 0 : index
      %c0_17 = arith.constant 0 : index
      %18 = vector.load %arg9[%c0_16, %c0_17] : memref<1x128xf32, #tpu.memory_space<vmem>>, vector<1x128xf32>
      %19 = arith.mulf %17, %18 : vector<1x128xf32>
      %20 = arith.addf %16, %19 : vector<1x128xf32>
      %c0_18 = arith.constant 0 : index
      %c0_19 = arith.constant 0 : index
      %21 = vector.load %arg11[%c0_18, %c0_19] : memref<8x128xf32, #tpu.memory_space<vmem>>, vector<8x128xf32>
      %22 = vector.broadcast %20 : vector<1x128xf32> to vector<8x128xf32>
      %23 = arith.addf %21, %22 : vector<8x128xf32>
      %c0_20 = arith.constant 0 : index
      %c0_21 = arith.constant 0 : index
      %24 = vector.load %arg10[%c0_20, %c0_21] : memref<8x128xf32, #tpu.memory_space<vmem>>, vector<8x128xf32>
      tpu.vector_store %arg10[%c0_20, %c0_21], %23 {strides = array<i32>} : memref<8x128xf32, #tpu.memory_space<vmem>>, vector<8x128xf32>,
    } else {
    }
    return
  }
  func.func @transform_0(%arg0: i32, %arg1: i32, %arg2: i32) -> (i32, i32) {
    %c0_i32 = arith.constant 0 : i32
    return %arg0, %arg2 : i32, i32
  }
  func.func @transform_1(%arg0: i32, %arg1: i32, %arg2: i32) -> (i32, i32) {
    %c0_i32 = arith.constant 0 : i32
    return %arg1, %arg2 : i32, i32
  }
  func.func @transform_2(%arg0: i32, %arg1: i32, %arg2: i32) -> (i32, i32) {
    %c0_i32 = arith.constant 0 : i32
    return %arg1, %arg2 : i32, i32
  }
  func.func @transform_3(%arg0: i32, %arg1: i32, %arg2: i32) -> (i32, i32) {
    %c0_i32 = arith.constant 0 : i32
    return %arg1, %arg2 : i32, i32
  }
  func.func @transform_4(%arg0: i32, %arg1: i32, %arg2: i32) -> (i32, i32) {
    %c0_i32 = arith.constant 0 : i32
    %c0_i32_0 = arith.constant 0 : i32
    return %c0_i32, %arg1 : i32, i32
  }
  func.func @transform_5(%arg0: i32, %arg1: i32, %arg2: i32) -> (i32, i32) {
    %c0_i32 = arith.constant 0 : i32
    %c0_i32_0 = arith.constant 0 : i32
    return %c0_i32, %arg1 : i32, i32
  }
  func.func @transform_6(%arg0: i32, %arg1: i32, %arg2: i32) -> (i32, i32) {
    %c0_i32 = arith.constant 0 : i32
    %c0_i32_0 = arith.constant 0 : i32
    return %c0_i32, %arg1 : i32, i32
  }
  func.func @transform_7(%arg0: i32, %arg1: i32, %arg2: i32) -> (i32, i32) {
    %c0_i32 = arith.constant 0 : i32
    return %arg0, %arg1 : i32, i32
  }
}

</mosaic_0001>

<llo_original>
// kernel: tpu_custom_call.1
$region0: #{tpu_custom_call.1}
  #allocation0 [shape = 'u32[]', space=smem, size = 0x4, offset = 0x4, fixed_abs, tag = 'smem constant byte address 0x4 - core index']
  #allocation1 [shape = 'u32[144,128]{1,0:T(1,128)}', space=vmem, size = 0x12000, scoped, tag = 'internal scratch']
  #allocation2 [shape = 'f32[8,128]{1,0:T(8,128)}', space=vmem, size = 0x1000, scoped, tag = 'scratch operand']
  %s0 = inlined_call_operand.hbm [shape: f32[8,128], index: 0, kind: input, shape index: {}]
  %s1 = inlined_call_operand.hbm [shape: f32[256,128], index: 1, kind: input, shape index: {}]
  %s2 = inlined_call_operand.hbm [shape: f32[256,128], index: 2, kind: input, shape index: {}]
  %s3 = inlined_call_operand.hbm [shape: f32[256,128], index: 3, kind: input, shape index: {}]
  %s4 = inlined_call_operand.vmem [shape: f32[1,256], index: 4, kind: input, shape index: {}]
  %s5 = inlined_call_operand.vmem [shape: f32[1,256], index: 5, kind: input, shape index: {}]
  %s6 = inlined_call_operand.vmem [shape: f32[1,256], index: 6, kind: input, shape index: {}]
  %s7 = inlined_call_operand.hbm [shape: f32[8,256], index: 7, kind: output, shape index: {}]
  %s8 = sld [smem:[#allocation0]]
  $region89: #{tpu_custom_call.1} parent=0
    _
  %s10 = ssub.s32 1, %s8
  %s11 = scalar_select 0, %s10, %s8
  $region1: #{tpu_custom_call.1} parent=0
    #allocation3 [shape = 'u8[4096]{0}', space=vmem, size = 0x1000, scoped, tag = 'input window, operand 0, single buffered']
    #allocation4 [shape = 's32[2]{0}', space=sflag, size = 0x8, scoped, tag = 'scoped memory for tpu_custom_call.1']
    #allocation5 [shape = 's32[2]{0}', space=sflag, size = 0x8, scoped, tag = 'scoped memory for tpu_custom_call.1']
    #allocation6 [shape = 'u8[131072]{0}', space=vmem, size = 0x20000, scoped, tag = 'input window, operand 1']
    #allocation7 [shape = 's32[2]{0}', space=sflag, size = 0x8, scoped, tag = 'scoped memory for tpu_custom_call.1']
    #allocation8 [shape = 'u8[131072]{0}', space=vmem, size = 0x20000, scoped, tag = 'input window, operand 2']
    #allocation9 [shape = 'u8[131072]{0}', space=vmem, size = 0x20000, scoped, tag = 'input window, operand 3']
    #allocation10 [shape = 's32[2]{0}', space=sflag, size = 0x8, scoped, tag = 'scoped memory for tpu_custom_call.1']
    #allocation11 [shape = 'u8[8192]{0}', space=vmem, size = 0x2000, scoped, tag = 'output window, operand 0']
    %12 = vsyncpa [#allocation4], 0
    %13 = vsyncpa [#allocation7], 0
    %s14 = scalar_lea.sflag [#allocation7], 1
    %15 = vsyncpa %s14, 0
    %16 = vsyncpa [#allocation10], 0
    %s17 = scalar_lea.sflag [#allocation10], 1
    %18 = vsyncpa %s17, 0
    %19 = vsyncpa [#allocation5], 0
    %s20 = scalar_lea.sflag [#allocation5], 1
    %21 = vsyncpa %s20, 0
    loop: start=0, step=1, limit=4
    $region2: #{tpu_custom_call.1} parent=1 // loop_pre_header
      _
    $region3: #{tpu_custom_call.1} parent=1 // loop_header
      %s23 = sphi 0, %s27
      %p24 = scmp.ge.s32.totalorder %s23, 4
      %s30 = sphi 0, %s49
      %s31 = sphi 0, %s45
      %s32 = sphi 0, %s41
      %s33 = sphi 0, %s30
      %s34 = sphi 0, %s31
      %s35 = sphi 0, %s32
      %s36 = sphi 0, %s33
      %s37 = sphi 0, %s34
      %s38 = sphi 0, %s35
      %s54 = sphi 0, %s56
      %s57 = sphi 0, %s54
      %s58 = sphi 0, %s57
      %s74 = sphi 0, %s58
      %s82 = sphi 0, %s84
      %s85 = sphi 0, %s82
      %s86 = sphi 0, %s85
      %s102 = sphi 0, %s86
      %s110 = sphi 0, %s112
      %s113 = sphi 0, %s110
      %s114 = sphi 0, %s113
      %s130 = sphi 0, %s114
      %s138 = sphi 0, %s140
      %s141 = sphi 0, %s138
      %s142 = sphi 0, %s141
      %s158 = sphi 0, %s142
      %s164 = sphi 0, %s166
      %s167 = sphi 0, %s164
      %s168 = sphi 0, %s167
      %s184 = sphi 0, %s168
      %s190 = sphi 0, %s192
      %s193 = sphi 0, %s190
      %s194 = sphi 0, %s193
      %s210 = sphi 0, %s194
      %s216 = sphi 0, %s218
      %s219 = sphi 0, %s216
      %s220 = sphi 0, %s219
      %s236 = sphi 0, %s220
      %s244 = sphi 0, %s246
      %s247 = sphi 0, %s244
      %s248 = sphi 0, %s247
      %s264 = sphi 0, %s248
    $region4: #{tpu_custom_call.1} parent=1 // loop_header_branch
      %26 = sbr.rel (%p24) target = $region8
    $region5: #{tpu_custom_call.1} parent=1 // loop_body
      %s28 = ssub.s32 %s23, 1
      %s29 = ssub.s32 %s23, 2
      %s39 = sadd.s32 1, %s32
      %p40 = scmp.ge.s32.totalorder %s39, 1
      %s41 = scalar_select %p40, 0, %s39
      %s42 = sadd.s32 1, %s31
      %s43 = scalar_select %p40, %s42, %s31
      %p44 = scmp.ge.s32.totalorder %s43, 2
      %s45 = scalar_select %p44, 0, %s43
      %s46 = sadd.s32 1, %s30
      %s47 = scalar_select %p44, %s46, %s30
      %p48 = scmp.ge.s32.totalorder %s47, 1
      %s49 = scalar_select %p48, 0, %s47
      %s50 = ssub.s32 %s30, %s49
      %s51 = ssub.s32 %s32, %s41
      %s52 = sor.u32 %s50, %s51
      %p53 = scmp.eq.s32.totalorder %s52, 0
      %s55 = sadd.s32 %s54, 1
      %s56 = scalar_select %p53, %s54, %s55
      %p59 = pneg %p53
      %p60 = scmp.eq.s32.totalorder %s23, 1
      %p61 = por %p59, %p60
      %p62 = scmp.ne.s32.totalorder %s54, %s57
      %p63 = scmp.eq.s32.totalorder %s23, 0
      %p64 = por %p62, %p63
      %p65 = scmp.ne.s32.totalorder %s54, %s57
      %p66 = scmp.eq.s32.totalorder %s28, 1
      %p67 = por %p65, %p66
      %p68 = scmp.ne.s32.totalorder %s57, %s58
      %p69 = scmp.eq.s32.totalorder %s28, 0
      %p70 = por %p68, %p69
      %p71 = scmp.ne.s32.totalorder %s57, %s58
      %p72 = scmp.eq.s32.totalorder %s29, 1
      %p73 = por %p71, %p72
      %p75 = scmp.ne.s32.totalorder %s58, %s74
      %p76 = scmp.eq.s32.totalorder %s29, 0
      %p77 = por %p75, %p76
      %s78 = ssub.s32 %s31, %s45
      %s79 = ssub.s32 %s32, %s41
      %s80 = sor.u32 %s78, %s79
      %p81 = scmp.eq.s32.totalorder %s80, 0
      %s83 = sadd.s32 %s82, 1
      %s84 = scalar_select %p81, %s82, %s83
      %p87 = pneg %p81
      %p88 = scmp.eq.s32.totalorder %s23, 1
      %p89 = por %p87, %p88
      %p90 = scmp.ne.s32.totalorder %s82, %s85
      %p91 = scmp.eq.s32.totalorder %s23, 0
      %p92 = por %p90, %p91
      %p93 = scmp.ne.s32.totalorder %s82, %s85
      %p94 = scmp.eq.s32.totalorder %s28, 1
      %p95 = por %p93, %p94
      %p96 = scmp.ne.s32.totalorder %s85, %s86
      %p97 = scmp.eq.s32.totalorder %s28, 0
      %p98 = por %p96, %p97
      %p99 = scmp.ne.s32.totalorder %s85, %s86
      %p100 = scmp.eq.s32.totalorder %s29, 1
      %p101 = por %p99, %p100
      %p103 = scmp.ne.s32.totalorder %s86, %s102
      %p104 = scmp.eq.s32.totalorder %s29, 0
      %p105 = por %p103, %p104
      %s106 = ssub.s32 %s31, %s45
      %s107 = ssub.s32 %s32, %s41
      %s108 = sor.u32 %s106, %s107
      %p109 = scmp.eq.s32.totalorder %s108, 0
      %s111 = sadd.s32 %s110, 1
      %s112 = scalar_select %p109, %s110, %s111
      %p115 = pneg %p109
      %p116 = scmp.eq.s32.totalorder %s23, 1
      %p117 = por %p115, %p116
      %p118 = scmp.ne.s32.totalorder %s110, %s113
      %p119 = scmp.eq.s32.totalorder %s23, 0
      %p120 = por %p118, %p119
      %p121 = scmp.ne.s32.totalorder %s110, %s113
      %p122 = scmp.eq.s32.totalorder %s28, 1
      %p123 = por %p121, %p122
      %p124 = scmp.ne.s32.totalorder %s113, %s114
      %p125 = scmp.eq.s32.totalorder %s28, 0
      %p126 = por %p124, %p125
      %p127 = scmp.ne.s32.totalorder %s113, %s114
      %p128 = scmp.eq.s32.totalorder %s29, 1
      %p129 = por %p127, %p128
      %p131 = scmp.ne.s32.totalorder %s114, %s130
      %p132 = scmp.eq.s32.totalorder %s29, 0
      %p133 = por %p131, %p132
      %s134 = ssub.s32 %s31, %s45
      %s135 = ssub.s32 %s32, %s41
      %s136 = sor.u32 %s134, %s135
      %p137 = scmp.eq.s32.totalorder %s136, 0
      %s139 = sadd.s32 %s138, 1
      %s140 = scalar_select %p137, %s138, %s139
      %p143 = pneg %p137
      %p144 = scmp.eq.s32.totalorder %s23, 1
      %p145 = por %p143, %p144
      %p146 = scmp.ne.s32.totalorder %s138, %s141
      %p147 = scmp.eq.s32.totalorder %s23, 0
      %p148 = por %p146, %p147
      %p149 = scmp.ne.s32.totalorder %s138, %s141
      %p150 = scmp.eq.s32.totalorder %s28, 1
      %p151 = por %p149, %p150
      %p152 = scmp.ne.s32.totalorder %s141, %s142
      %p153 = scmp.eq.s32.totalorder %s28, 0
      %p154 = por %p152, %p153
      %p155 = scmp.ne.s32.totalorder %s141, %s142
      %p156 = scmp.eq.s32.totalorder %s29, 1
      %p157 = por %p155, %p156
      %p159 = scmp.ne.s32.totalorder %s142, %s158
      %p160 = scmp.eq.s32.totalorder %s29, 0
      %p161 = por %p159, %p160
      %s162 = ssub.s32 %s31, %s45
      %p163 = scmp.eq.s32.totalorder %s162, 0
      %s165 = sadd.s32 %s164, 1
      %s166 = scalar_select %p163, %s164, %s165
      %p169 = pneg %p163
      %p170 = scmp.eq.s32.totalorder %s23, 1
      %p171 = por %p169, %p170
      %p172 = scmp.ne.s32.totalorder %s164, %s167
      %p173 = scmp.eq.s32.totalorder %s23, 0
      %p174 = por %p172, %p173
      %p175 = scmp.ne.s32.totalorder %s164, %s167
      %p176 = scmp.eq.s32.totalorder %s28, 1
      %p177 = por %p175, %p176
      %p178 = scmp.ne.s32.totalorder %s167, %s168
      %p179 = scmp.eq.s32.totalorder %s28, 0
      %p180 = por %p178, %p179
      %p181 = scmp.ne.s32.totalorder %s167, %s168
      %p182 = scmp.eq.s32.totalorder %s29, 1
      %p183 = por %p181, %p182
      %p185 = scmp.ne.s32.totalorder %s168, %s184
      %p186 = scmp.eq.s32.totalorder %s29, 0
      %p187 = por %p185, %p186
      %s188 = ssub.s32 %s31, %s45
      %p189 = scmp.eq.s32.totalorder %s188, 0
      %s191 = sadd.s32 %s190, 1
      %s192 = scalar_select %p189, %s190, %s191
      %p195 = pneg %p189
      %p196 = scmp.eq.s32.totalorder %s23, 1
      %p197 = por %p195, %p196
      %p198 = scmp.ne.s32.totalorder %s190, %s193
      %p199 = scmp.eq.s32.totalorder %s23, 0
      %p200 = por %p198, %p199
      %p201 = scmp.ne.s32.totalorder %s190, %s193
      %p202 = scmp.eq.s32.totalorder %s28, 1
      %p203 = por %p201, %p202
      %p204 = scmp.ne.s32.totalorder %s193, %s194
      %p205 = scmp.eq.s32.totalorder %s28, 0
      %p206 = por %p204, %p205
      %p207 = scmp.ne.s32.totalorder %s193, %s194
      %p208 = scmp.eq.s32.totalorder %s29, 1
      %p209 = por %p207, %p208
      %p211 = scmp.ne.s32.totalorder %s194, %s210
      %p212 = scmp.eq.s32.totalorder %s29, 0
      %p213 = por %p211, %p212
      %s214 = ssub.s32 %s31, %s45
      %p215 = scmp.eq.s32.totalorder %s214, 0
      %s217 = sadd.s32 %s216, 1
      %s218 = scalar_select %p215, %s216, %s217
      %p221 = pneg %p215
      %p222 = scmp.eq.s32.totalorder %s23, 1
      %p223 = por %p221, %p222
      %p224 = scmp.ne.s32.totalorder %s216, %s219
      %p225 = scmp.eq.s32.totalorder %s23, 0
      %p226 = por %p224, %p225
      %p227 = scmp.ne.s32.totalorder %s216, %s219
      %p228 = scmp.eq.s32.totalorder %s28, 1
      %p229 = por %p227, %p228
      %p230 = scmp.ne.s32.totalorder %s219, %s220
      %p231 = scmp.eq.s32.totalorder %s28, 0
      %p232 = por %p230, %p231
      %p233 = scmp.ne.s32.totalorder %s219, %s220
      %p234 = scmp.eq.s32.totalorder %s29, 1
      %p235 = por %p233, %p234
      %p237 = scmp.ne.s32.totalorder %s220, %s236
      %p238 = scmp.eq.s32.totalorder %s29, 0
      %p239 = por %p237, %p238
      %s240 = ssub.s32 %s30, %s49
      %s241 = ssub.s32 %s31, %s45
      %s242 = sor.u32 %s240, %s241
      %p243 = scmp.eq.s32.totalorder %s242, 0
      %s245 = sadd.s32 %s244, 1
      %s246 = scalar_select %p243, %s244, %s245
      %p249 = pneg %p243
      %p250 = scmp.eq.s32.totalorder %s23, 1
      %p251 = por %p249, %p250
      %p252 = scmp.ne.s32.totalorder %s244, %s247
      %p253 = scmp.eq.s32.totalorder %s23, 0
      %p254 = por %p252, %p253
      %p255 = scmp.ne.s32.totalorder %s244, %s247
      %p256 = scmp.eq.s32.totalorder %s28, 1
      %p257 = por %p255, %p256
      %p258 = scmp.ne.s32.totalorder %s247, %s248
      %p259 = scmp.eq.s32.totalorder %s28, 0
      %p260 = por %p258, %p259
      %p261 = scmp.ne.s32.totalorder %s247, %s248
      %p262 = scmp.eq.s32.totalorder %s29, 1
      %p263 = por %p261, %p262
      %p265 = scmp.ne.s32.totalorder %s248, %s264
      %p266 = scmp.eq.s32.totalorder %s29, 0
      %p267 = por %p265, %p266
      %p268 = scmp.le.s32.totalorder 1, %s23
      %p269 = scmp.lt.s32.totalorder %s23, 3
      %p270 = pnand %p268, %p269
      %p271 = pneg %p270
      // Predicated region
      $region9: #{tpu_custom_call.1} parent=5 // pred_check
        _
      $region10: #{tpu_custom_call.1} parent=5 // pred_check_branch
        %273 = sbr.rel (%p270) target = $region12
      $region11: #{tpu_custom_call.1} parent=5 // pred_region
        %s274 = ssub.s32 %s23, 1
        // Predicated region
        $region13: #{tpu_custom_call.1} parent=11 // pred_check
          %p275 = pneg %p70
        $region14: #{tpu_custom_call.1} parent=11 // pred_check_branch
          %277 = sbr.rel (%p275) target = $region16
        $region15: #{tpu_custom_call.1} parent=11 // pred_region
          %s279 = ssub.s32 128, 128
          %280 = vsyncadd [#allocation4], %s279
          %s281 = sadd.s32 %s35, %s33
          %s282 = smul.addr %s281, 128
          %s283 = scalar_lea.hbm %s0, %s282
          %s285 = sshll.u32 [#allocation3], 4
          %s286 = int_to_ptr.vmem [resolvable:$true] %s285
          %288 = dma.hbm_to_vmem [thread:$0]  %s283, 128, %s286, [#allocation4]
        $region16: #{tpu_custom_call.1} parent=11 // pred_fallthru
          _
      $region12: #{tpu_custom_call.1} parent=5 // pred_fallthru
        _
      %p289 = scmp.lt.s32.totalorder %s23, 2
      // Predicated region
      $region17: #{tpu_custom_call.1} parent=5 // pred_check
        %p290 = pneg %p289
      $region18: #{tpu_custom_call.1} parent=5 // pred_check_branch
        %292 = sbr.rel (%p290) target = $region20
      $region19: #{tpu_custom_call.1} parent=5 // pred_region
        // Predicated region
        $region21: #{tpu_custom_call.1} parent=19 // pred_check
          %p293 = pneg %p92
        $region22: #{tpu_custom_call.1} parent=19 // pred_check_branch
          %295 = sbr.rel (%p293) target = $region24
        $region23: #{tpu_custom_call.1} parent=19 // pred_region
          %s296 = sand.u32 %s23, 1
          %s297 = scalar_lea.sflag [#allocation7], %s296
          %s298 = sand.u32 %s82, 1
          %s299 = smul.addr %s298, 128
          %s300 = scalar_lea.vmem [#allocation6], %s299
          %s301 = smul.u32 16, %s31
          %s303 = ssub.s32 2048, 2048
          %304 = vsyncadd %s297, %s303
          %s305 = sadd.s32 %s32, %s301
          %s306 = smul.addr %s305, 128
          %s307 = scalar_lea.hbm %s1, %s306
          %s308 = sshll.u32 %s300, 4
          %s309 = int_to_ptr.vmem [resolvable:$true] %s308
          %314 = dma.hbm_to_vmem [thread:$0]  %s307, 2048, %s309, %s297, 128, 128, 8
        $region24: #{tpu_custom_call.1} parent=19 // pred_fallthru
          _
        // Predicated region
        $region25: #{tpu_custom_call.1} parent=19 // pred_check
          %p315 = pneg %p120
        $region26: #{tpu_custom_call.1} parent=19 // pred_check_branch
          %317 = sbr.rel (%p315) target = $region28
        $region27: #{tpu_custom_call.1} parent=19 // pred_region
          %s318 = sand.u32 %s23, 1
          %s319 = scalar_lea.sflag [#allocation7], %s318
          %s320 = sand.u32 %s110, 1
          %s321 = smul.addr %s320, 128
          %s322 = scalar_lea.vmem [#allocation8], %s321
          %s323 = smul.u32 16, %s31
          %s325 = ssub.s32 2048, 2048
          %326 = vsyncadd %s319, %s325
          %s327 = sadd.s32 %s32, %s323
          %s328 = smul.addr %s327, 128
          %s329 = scalar_lea.hbm %s2, %s328
          %s330 = sshll.u32 %s322, 4
          %s331 = int_to_ptr.vmem [resolvable:$true] %s330
          %336 = dma.hbm_to_vmem [thread:$0]  %s329, 2048, %s331, %s319, 128, 128, 8
        $region28: #{tpu_custom_call.1} parent=19 // pred_fallthru
          _
        // Predicated region
        $region29: #{tpu_custom_call.1} parent=19 // pred_check
          %p337 = pneg %p148
        $region30: #{tpu_custom_call.1} parent=19 // pred_check_branch
          %339 = sbr.rel (%p337) target = $region32
        $region31: #{tpu_custom_call.1} parent=19 // pred_region
          %s340 = sand.u32 %s138, 1
          %s341 = scalar_lea.sflag [#allocation10], %s340
          %s342 = sand.u32 %s138, 1
          %s343 = smul.addr %s342, 128
          %s344 = scalar_lea.vmem [#allocation9], %s343
          %s345 = smul.u32 16, %s31
          %s347 = ssub.s32 2048, 2048
          %348 = vsyncadd %s341, %s347
          %s349 = sadd.s32 %s32, %s345
          %s350 = smul.addr %s349, 128
          %s351 = scalar_lea.hbm %s3, %s350
          %s352 = sshll.u32 %s344, 4
          %s353 = int_to_ptr.vmem [resolvable:$true] %s352
          %358 = dma.hbm_to_vmem [thread:$0]  %s351, 2048, %s353, %s341, 128, 128, 8
        $region32: #{tpu_custom_call.1} parent=19 // pred_fallthru
          _
        // Predicated region
        $region33: #{tpu_custom_call.1} parent=19 // pred_check
          %p359 = pneg %p174
        $region34: #{tpu_custom_call.1} parent=19 // pred_check_branch
          %361 = sbr.rel (%p359) target = $region36
        $region35: #{tpu_custom_call.1} parent=19 // pred_region
          %p362 = scmp.lt.s32.totalorder %s31, 1
          %s363 = scalar_select %p362, %s31, 1
          %s364 = scalar_lea.vmem %s4, %s363
        $region36: #{tpu_custom_call.1} parent=19 // pred_fallthru
          _
        // Predicated region
        $region37: #{tpu_custom_call.1} parent=19 // pred_check
          %p365 = pneg %p200
        $region38: #{tpu_custom_call.1} parent=19 // pred_check_branch
          %367 = sbr.rel (%p365) target = $region40
        $region39: #{tpu_custom_call.1} parent=19 // pred_region
          %p368 = scmp.lt.s32.totalorder %s31, 1
          %s369 = scalar_select %p368, %s31, 1
          %s370 = scalar_lea.vmem %s5, %s369
        $region40: #{tpu_custom_call.1} parent=19 // pred_fallthru
          _
        // Predicated region
        $region41: #{tpu_custom_call.1} parent=19 // pred_check
          %p371 = pneg %p226
        $region42: #{tpu_custom_call.1} parent=19 // pred_check_branch
          %373 = sbr.rel (%p371) target = $region44
        $region43: #{tpu_custom_call.1} parent=19 // pred_region
          %p374 = scmp.lt.s32.totalorder %s31, 1
          %s375 = scalar_select %p374, %s31, 1
          %s376 = scalar_lea.vmem %s6, %s375
        $region44: #{tpu_custom_call.1} parent=19 // pred_fallthru
          _
      $region20: #{tpu_custom_call.1} parent=5 // pred_fallthru
        _
      %p377 = scmp.le.s32.totalorder 1, %s23
      %p378 = scmp.lt.s32.totalorder %s23, 3
      %p379 = pnand %p377, %p378
      %p380 = pneg %p379
      // Predicated region
      $region45: #{tpu_custom_call.1} parent=5 // pred_check
        _
      $region46: #{tpu_custom_call.1} parent=5 // pred_check_branch
        %382 = sbr.rel (%p379) target = $region48
      $region47: #{tpu_custom_call.1} parent=5 // pred_region
        %s383 = ssub.s32 %s23, 1
        // Predicated region
        $region49: #{tpu_custom_call.1} parent=47 // pred_check
          %p384 = pneg %p70
        $region50: #{tpu_custom_call.1} parent=47 // pred_check_branch
          %386 = sbr.rel (%p384) target = $region52
        $region51: #{tpu_custom_call.1} parent=47 // pred_region
          %387 = dma.done [#allocation4], 128
        $region52: #{tpu_custom_call.1} parent=47 // pred_fallthru
          _
        %s388 = sand.u32 %s28, 1
        %s389 = scalar_lea.sflag [#allocation7], %s388
        %s390 = sand.u32 %s85, 1
        %s391 = smul.addr %s390, 128
        %s392 = scalar_lea.vmem [#allocation6], %s391
        // Predicated region
        $region53: #{tpu_custom_call.1} parent=47 // pred_check
          %p393 = pneg %p98
        $region54: #{tpu_custom_call.1} parent=47 // pred_check_branch
          %395 = sbr.rel (%p393) target = $region56
        $region55: #{tpu_custom_call.1} parent=47 // pred_region
          %396 = dma.done %s389, 2048
        $region56: #{tpu_custom_call.1} parent=47 // pred_fallthru
          _
        %s397 = sand.u32 %s28, 1
        %s398 = scalar_lea.sflag [#allocation7], %s397
        %s399 = sand.u32 %s113, 1
        %s400 = smul.addr %s399, 128
        %s401 = scalar_lea.vmem [#allocation8], %s400
        // Predicated region
        $region57: #{tpu_custom_call.1} parent=47 // pred_check
          %p402 = pneg %p126
        $region58: #{tpu_custom_call.1} parent=47 // pred_check_branch
          %404 = sbr.rel (%p402) target = $region60
        $region59: #{tpu_custom_call.1} parent=47 // pred_region
          %405 = dma.done %s398, 2048
        $region60: #{tpu_custom_call.1} parent=47 // pred_fallthru
          _
        %s406 = sand.u32 %s141, 1
        %s407 = scalar_lea.sflag [#allocation10], %s406
        %s408 = sand.u32 %s141, 1
        %s409 = smul.addr %s408, 128
        %s410 = scalar_lea.vmem [#allocation9], %s409
        // Predicated region
        $region61: #{tpu_custom_call.1} parent=47 // pred_check
          %p411 = pneg %p154
        $region62: #{tpu_custom_call.1} parent=47 // pred_check_branch
          %413 = sbr.rel (%p411) target = $region64
        $region63: #{tpu_custom_call.1} parent=47 // pred_region
          %414 = dma.done %s407, 2048
        $region64: #{tpu_custom_call.1} parent=47 // pred_fallthru
          _
        %p415 = pneg %p70
        %p416 = pneg %p67
        %s417 = sand.u32 %s28, 1
        %s418 = scalar_lea.sflag [#allocation7], %s417
        %s419 = sand.u32 %s85, 1
        %s420 = smul.addr %s419, 128
        %s421 = scalar_lea.vmem [#allocation6], %s420
        %p422 = pneg %p98
        %p423 = pneg %p95
        %s424 = sand.u32 %s28, 1
        %s425 = scalar_lea.sflag [#allocation7], %s424
        %s426 = sand.u32 %s113, 1
        %s427 = smul.addr %s426, 128
        %s428 = scalar_lea.vmem [#allocation8], %s427
        %p429 = pneg %p126
        %p430 = pneg %p123
        %s431 = sand.u32 %s141, 1
        %s432 = scalar_lea.sflag [#allocation10], %s431
        %s433 = sand.u32 %s141, 1
        %s434 = smul.addr %s433, 128
        %s435 = scalar_lea.vmem [#allocation9], %s434
        %p436 = pneg %p154
        %p437 = pneg %p151
        %p438 = scmp.lt.s32.totalorder %s34, 1
        %s439 = scalar_select %p438, %s34, 1
        %s440 = scalar_lea.vmem %s4, %s439
        %p441 = pneg %p180
        %p442 = pneg %p177
        %p443 = scmp.lt.s32.totalorder %s34, 1
        %s444 = scalar_select %p443, %s34, 1
        %s445 = scalar_lea.vmem %s5, %s444
        %p446 = pneg %p206
        %p447 = pneg %p203
        %p448 = scmp.lt.s32.totalorder %s34, 1
        %s449 = scalar_select %p448, %s34, 1
        %s450 = scalar_lea.vmem %s6, %s449
        %p451 = pneg %p232
        %p452 = pneg %p229
        %p453 = pneg %p260
        %p454 = pneg %p257
        %s455 = sand.u32 %s247, 1
        %s456 = scalar_lea.sflag [#allocation5], %s455
        %s457 = sand.u32 %s247, 1
        %s458 = smul.addr %s457, 8
        %s459 = scalar_lea.vmem [#allocation11], %s458
        %s460 = smul.u32 16, %s34
        %s461 = smul.u32 16, %s34
        %s462 = smul.u32 16, %s34
        %p463 = scmp.lt.s32.totalorder %s34, 1
        %s464 = scalar_select %p463, %s34, 1
        %s465 = scalar_lea.vmem %s4, %s464
        %p466 = scmp.lt.s32.totalorder %s34, 1
        %s467 = scalar_select %p466, %s34, 1
        %s468 = scalar_lea.vmem %s5, %s467
        %p469 = scmp.lt.s32.totalorder %s34, 1
        %s470 = scalar_select %p469, %s34, 1
        %s471 = scalar_lea.vmem %s6, %s470
        %v472 = vld [vmem:[%s392] sm:$0xff]
        %v473 = vld [vmem:[%s392 + $0x8] sm:$0xff]
        %v474 = vld [vmem:[%s392 + $0x10] sm:$0xff]
        %v475 = vld [vmem:[%s392 + $0x18] sm:$0xff]
        %v476 = vld [vmem:[%s392 + $0x20] sm:$0xff]
        %v477 = vld [vmem:[%s392 + $0x28] sm:$0xff]
        %v478 = vld [vmem:[%s392 + $0x30] sm:$0xff]
        %v479 = vld [vmem:[%s392 + $0x38] sm:$0xff]
        %v480 = vld [vmem:[%s392 + $0x40] sm:$0xff]
        %v481 = vld [vmem:[%s392 + $0x48] sm:$0xff]
        %v482 = vld [vmem:[%s392 + $0x50] sm:$0xff]
        %v483 = vld [vmem:[%s392 + $0x58] sm:$0xff]
        %v484 = vld [vmem:[%s392 + $0x60] sm:$0xff]
        %v485 = vld [vmem:[%s392 + $0x68] sm:$0xff]
        %v486 = vld [vmem:[%s392 + $0x70] sm:$0xff]
        %v487 = vld [vmem:[%s392 + $0x78] sm:$0xff]
        %v488 = vld [vmem:[%s401] sm:$0xff]
        %v489 = vld [vmem:[%s401 + $0x8] sm:$0xff]
        %v490 = vld [vmem:[%s401 + $0x10] sm:$0xff]
        %v491 = vld [vmem:[%s401 + $0x18] sm:$0xff]
        %v492 = vld [vmem:[%s401 + $0x20] sm:$0xff]
        %v493 = vld [vmem:[%s401 + $0x28] sm:$0xff]
        %v494 = vld [vmem:[%s401 + $0x30] sm:$0xff]
        %v495 = vld [vmem:[%s401 + $0x38] sm:$0xff]
        %v496 = vld [vmem:[%s401 + $0x40] sm:$0xff]
        %v497 = vld [vmem:[%s401 + $0x48] sm:$0xff]
        %v498 = vld [vmem:[%s401 + $0x50] sm:$0xff]
        %v499 = vld [vmem:[%s401 + $0x58] sm:$0xff]
        %v500 = vld [vmem:[%s401 + $0x60] sm:$0xff]
        %v501 = vld [vmem:[%s401 + $0x68] sm:$0xff]
        %v502 = vld [vmem:[%s401 + $0x70] sm:$0xff]
        %v503 = vld [vmem:[%s401 + $0x78] sm:$0xff]
        %v504 = vld [vmem:[%s410] sm:$0xff]
        %v505 = vld [vmem:[%s410 + $0x8] sm:$0xff]
        %v506 = vld [vmem:[%s410 + $0x10] sm:$0xff]
        %v507 = vld [vmem:[%s410 + $0x18] sm:$0xff]
        %v508 = vld [vmem:[%s410 + $0x20] sm:$0xff]
        %v509 = vld [vmem:[%s410 + $0x28] sm:$0xff]
        %v510 = vld [vmem:[%s410 + $0x30] sm:$0xff]
        %v511 = vld [vmem:[%s410 + $0x38] sm:$0xff]
        %v512 = vld [vmem:[%s410 + $0x40] sm:$0xff]
        %v513 = vld [vmem:[%s410 + $0x48] sm:$0xff]
        %v514 = vld [vmem:[%s410 + $0x50] sm:$0xff]
        %v515 = vld [vmem:[%s410 + $0x58] sm:$0xff]
        %v516 = vld [vmem:[%s410 + $0x60] sm:$0xff]
        %v517 = vld [vmem:[%s410 + $0x68] sm:$0xff]
        %v518 = vld [vmem:[%s410 + $0x70] sm:$0xff]
        %v519 = vld [vmem:[%s410 + $0x78] sm:$0xff]
        %v520 = vmul.f32 %v488, %v504
        %v521 = vmul.f32 %v489, %v505
        %v522 = vmul.f32 %v490, %v506
        %v523 = vmul.f32 %v491, %v507
        %v524 = vmul.f32 %v492, %v508
        %v525 = vmul.f32 %v493, %v509
        %v526 = vmul.f32 %v494, %v510
        %v527 = vmul.f32 %v495, %v511
        %v528 = vmul.f32 %v496, %v512
        %v529 = vmul.f32 %v497, %v513
        %v530 = vmul.f32 %v498, %v514
        %v531 = vmul.f32 %v499, %v515
        %v532 = vmul.f32 %v500, %v516
        %v533 = vmul.f32 %v501, %v517
        %v534 = vmul.f32 %v502, %v518
        %v535 = vmul.f32 %v503, %v519
        %v536 = vadd.f32 %v472, %v520
        %v537 = vadd.f32 %v473, %v521
        %v538 = vadd.f32 %v474, %v522
        %v539 = vadd.f32 %v475, %v523
        %v540 = vadd.f32 %v476, %v524
        %v541 = vadd.f32 %v477, %v525
        %v542 = vadd.f32 %v478, %v526
        %v543 = vadd.f32 %v479, %v527
        %v544 = vadd.f32 %v480, %v528
        %v545 = vadd.f32 %v481, %v529
        %v546 = vadd.f32 %v482, %v530
        %v547 = vadd.f32 %v483, %v531
        %v548 = vadd.f32 %v484, %v532
        %v549 = vadd.f32 %v485, %v533
        %v550 = vadd.f32 %v486, %v534
        %v551 = vadd.f32 %v487, %v535
        %v552 = vld [vmem:[#allocation3] sm:$0xff]
        %553 = vmatprep.subr.mxu0 0.0
        %554 = vmatpush1.xpose.msra.mxu0 %v536
        %555 = vmatprep.subr.mxu0 0.0
        %556 = vmatpush1.xpose.msra.mxu0 %v537
        %557 = vmatprep.subr.mxu0 0.0
        %558 = vmatpush1.xpose.msra.mxu0 %v538
        %559 = vmatprep.subr.mxu0 0.0
        %560 = vmatpush1.xpose.msra.mxu0 %v539
        %561 = vmatprep.subr.mxu0 0.0
        %562 = vmatpush1.xpose.msra.mxu0 %v540
        %563 = vmatprep.subr.mxu0 0.0
        %564 = vmatpush1.xpose.msra.mxu0 %v541
        %565 = vmatprep.subr.mxu0 0.0
        %566 = vmatpush1.xpose.msra.mxu0 %v542
        %567 = vmatprep.subr.mxu0 0.0
        %568 = vmatpush1.xpose.msra.mxu0 %v543
        %569 = vmatprep.subr.mxu0 0.0
        %570 = vmatpush1.xpose.msra.mxu0 %v544
        %571 = vmatprep.subr.mxu0 0.0
        %572 = vmatpush1.xpose.msra.mxu0 %v545
        %573 = vmatprep.subr.mxu0 0.0
        %574 = vmatpush1.xpose.msra.mxu0 %v546
        %575 = vmatprep.subr.mxu0 0.0
        %576 = vmatpush1.xpose.msra.mxu0 %v547
        %577 = vmatprep.subr.mxu0 0.0
        %578 = vmatpush1.xpose.msra.mxu0 %v548
        %579 = vmatprep.subr.mxu0 0.0
        %580 = vmatpush1.xpose.msra.mxu0 %v549
        %581 = vmatprep.subr.mxu0 0.0
        %582 = vmatpush1.xpose.msra.mxu0 %v550
        %583 = vmatprep.subr.mxu0 0.0
        %584 = vmatpush1.xpose.msra.mxu0 %v551
        %585 = vmatprep.subr.mxu0 0.0
        %586 = vmatpush1.xpose.msra.mxu0 0.0
        %587 = vmatprep.subr.mxu0 0.0
        %588 = vmatpush1.xpose.msra.mxu0 0.0
        %589 = vmatprep.subr.mxu0 0.0
        %590 = vmatpush1.xpose.msra.mxu0 0.0
        %591 = vmatprep.subr.mxu0 0.0
        %592 = vmatpush1.xpose.msra.mxu0 0.0
        %593 = vmatprep.subr.mxu0 0.0
        %594 = vmatpush1.xpose.msra.mxu0 0.0
        %595 = vmatprep.subr.mxu0 0.0
        %596 = vmatpush1.xpose.msra.mxu0 0.0
        %597 = vmatprep.subr.mxu0 0.0
        %598 = vmatpush1.xpose.msra.mxu0 0.0
        %599 = vmatprep.subr.mxu0 0.0
        %600 = vmatpush1.xpose.msra.mxu0 0.0
        %601 = vmatprep.subr.mxu0 0.0
        %602 = vmatpush1.xpose.msra.mxu0 0.0
        %603 = vmatprep.subr.mxu0 0.0
        %604 = vmatpush1.xpose.msra.mxu0 0.0
        %605 = vmatprep.subr.mxu0 0.0
        %606 = vmatpush1.xpose.msra.mxu0 0.0
        %607 = vmatprep.subr.mxu0 0.0
        %608 = vmatpush1.xpose.msra.mxu0 0.0
        %609 = vmatprep.subr.mxu0 0.0
        %610 = vmatpush1.xpose.msra.mxu0 0.0
        %611 = vmatprep.subr.mxu0 0.0
        %612 = vmatpush1.xpose.msra.mxu0 0.0
        %613 = vmatprep.subr.mxu0 0.0
        %614 = vmatpush1.xpose.msra.mxu0 0.0
        %615 = vmatprep.subr.mxu0 0.0
        %616 = vmatpush1.xpose.msra.mxu0 0.0
        %617 = vmatprep.mubr.f32.mxu0 0.0
        %618 = vmatmul.mubr.f32.gmra.mrb[0].mxu0 %v552
        %v619 = vpop.f32.mrb[0].mxu0
        %v620 = vadd.f32 0.0, %v619
        %v621 = vpop.f32.mrb[0].mxu0
        %622 = vdwg.mxu0
        %p623 = scmp.eq.s32.totalorder %s35, 0
        // Predicated region
        $region65: #{tpu_custom_call.1} parent=47 // pred_check
          %p624 = pneg %p623
        $region66: #{tpu_custom_call.1} parent=47 // pred_check_branch
          %626 = sbr.rel (%p624) target = $region68
        $region67: #{tpu_custom_call.1} parent=47 // pred_region
          %627 = vst [vmem:[#allocation2] sm:$0xff] %v620
        $region68: #{tpu_custom_call.1} parent=47 // pred_fallthru
          _
        %p628 = scmp.gt.s32.totalorder %s35, 0
        // Predicated region
        $region69: #{tpu_custom_call.1} parent=47 // pred_check
          %p629 = pneg %p628
        $region70: #{tpu_custom_call.1} parent=47 // pred_check_branch
          %631 = sbr.rel (%p629) target = $region72
        $region71: #{tpu_custom_call.1} parent=47 // pred_region
          %v632 = vld [vmem:[#allocation2] sm:$0xff]
          %v633 = vadd.f32 %v632, %v620
          %634 = vst [vmem:[#allocation2] sm:$0xff] %v633
        $region72: #{tpu_custom_call.1} parent=47 // pred_fallthru
          _
        // Predicated region
        $region73: #{tpu_custom_call.1} parent=47 // pred_check
          %p635 = pneg %p623
        $region74: #{tpu_custom_call.1} parent=47 // pred_check_branch
          %637 = sbr.rel (%p635) target = $region76
        $region75: #{tpu_custom_call.1} parent=47 // pred_region
          %v638 = vld [vmem:[%s465] sm:$0x1]
          %v639 = vld [vmem:[%s468] sm:$0x1]
          %v640 = vld [vmem:[%s471] sm:$0x1]
          %v641 = vmul.f32 %v639, %v640
          %v642 = vadd.f32 %v638, %v641
          %v643 = vld [vmem:[#allocation2] sm:$0xff]
          %v645 = vlaneseq
          %v646 = vshrl.u32 %v645, 7
          %v647 = vsub.s32 0, %v646
          %v648 = vrot.slane %v642, %v647
          %v650 = vadd.f32 %v643, %v648
          %651 = vst [vmem:[%s459] sm:$0xff] %v650
        $region76: #{tpu_custom_call.1} parent=47 // pred_fallthru
          _
        %s652 = sand.u32 %s247, 1
        %s653 = scalar_lea.sflag [#allocation5], %s652
        %s654 = sand.u32 %s247, 1
        %s655 = smul.addr %s654, 8
        %s656 = scalar_lea.vmem [#allocation11], %s655
        // Predicated region
        $region77: #{tpu_custom_call.1} parent=47 // pred_check
          %p657 = pneg %p257
        $region78: #{tpu_custom_call.1} parent=47 // pred_check_branch
          %659 = sbr.rel (%p657) target = $region80
        $region79: #{tpu_custom_call.1} parent=47 // pred_region
          %s661 = ssub.s32 128, 128
          %662 = vsyncadd %s653, %s661
          %s663 = smul.addr %s33, 2
          %s664 = sadd.s32 %s34, %s663
          %s665 = smul.addr %s664, 128
          %s666 = scalar_lea.hbm %s7, %s665
          %s668 = sshll.u32 %s656, 4
          %s669 = int_to_ptr.vmem [resolvable:$true] %s668
          %671 = dma.vmem_to_hbm [thread:$0]  %s669, 128, %s666, %s653
        $region80: #{tpu_custom_call.1} parent=47 // pred_fallthru
          _
      $region48: #{tpu_custom_call.1} parent=5 // pred_fallthru
        _
      %p672 = scmp.le.s32.totalorder 2, %s23
      // Predicated region
      $region81: #{tpu_custom_call.1} parent=5 // pred_check
        %p673 = pneg %p672
      $region82: #{tpu_custom_call.1} parent=5 // pred_check_branch
        %675 = sbr.rel (%p673) target = $region84
      $region83: #{tpu_custom_call.1} parent=5 // pred_region
        %s676 = ssub.s32 %s23, 2
        // Predicated region
        $region85: #{tpu_custom_call.1} parent=83 // pred_check
          %p677 = pneg %p263
        $region86: #{tpu_custom_call.1} parent=83 // pred_check_branch
          %679 = sbr.rel (%p677) target = $region88
        $region87: #{tpu_custom_call.1} parent=83 // pred_region
          %s680 = sand.u32 %s248, 1
          %s681 = scalar_lea.sflag [#allocation5], %s680
          %s682 = sand.u32 %s248, 1
          %s683 = smul.addr %s682, 8
          %s684 = scalar_lea.vmem [#allocation11], %s683
          %685 = dma.done %s681, 128
        $region88: #{tpu_custom_call.1} parent=83 // pred_fallthru
          _
      $region84: #{tpu_custom_call.1} parent=5 // pred_fallthru
        _
    $region6: #{tpu_custom_call.1} parent=1 // loop_footer
      %s27 = sadd.s32 1, %s23
    $region7: #{tpu_custom_call.1} parent=1 // loop_footer_branch
      %22 = sbr.rel target = $region3
    $region8: #{tpu_custom_call.1} parent=1 // loop_exit
      _
    %686 = vsyncpa [#allocation4], 1
    %s687 = scalar_lea.sflag [#allocation4], 1
    %688 = vsyncpa %s687, 1
    %689 = vsyncpa [#allocation7], 1
    %s690 = scalar_lea.sflag [#allocation7], 1
    %691 = vsyncpa %s690, 1
    %692 = vsyncpa [#allocation10], 1
    %s693 = scalar_lea.sflag [#allocation10], 1
    %694 = vsyncpa %s693, 1
    %695 = vsyncpa [#allocation5], 1
    %s696 = scalar_lea.sflag [#allocation5], 1
    %697 = vsyncpa %s696, 1

</llo_original>
